<compile_context>
chip_gen: v7x
topology: tpu7x:2x2x1
jax: 0.10.0
libtpu: 0.0.40
codegen_flags: <defaults>
</compile_context>

<pallas_src>
import functools

import jax
import jax.numpy as jnp
from jax.experimental import pallas as pl
from jax.experimental.pallas import tpu as pltpu


# ----------------------------------------------------------------------------
# Path 1: embedding table resident in VMEM (small / medium tables).
# ----------------------------------------------------------------------------
def _resident_gather_kernel(tm, idx_ref, w_ref, o_ref):
    # idx_ref: SMEM (N_pad,) int32 scalar-prefetched indices
    # w_ref:   VMEM (V, D) full table, resident across the grid
    # o_ref:   VMEM (tm, D) dense output tile
    base = pl.program_id(0) * tm
    for j in range(tm):
        o_ref[j, :] = w_ref[idx_ref[base + j]]   # dynamic VMEM row load


# ----------------------------------------------------------------------------
# Path 2: table stays in HBM, manual batched row-gather DMAs, double-buffered.
# ----------------------------------------------------------------------------
def _issue_block(idx_ref, w_hbm, scratch, sems, block, slot, tm):
    base = block * tm
    for j in range(tm):
        row = idx_ref[base + j]
        pltpu.make_async_copy(
            w_hbm.at[row], scratch.at[slot, j], sems.at[slot, j]
        ).start()


def _wait_block(idx_ref, w_hbm, scratch, sems, block, slot, tm):
    base = block * tm
    for j in range(tm):
        row = idx_ref[base + j]
        pltpu.make_async_copy(
            w_hbm.at[row], scratch.at[slot, j], sems.at[slot, j]
        ).wait()


def _hbm_gather_kernel(tm, idx_ref, w_hbm, o_ref, scratch, sems):
    # idx_ref: SMEM (N_pad,) int32 scalar-prefetched indices
    # w_hbm:   HBM (V, D) table (memory_space=pl.ANY)
    # o_ref:   VMEM (tm, D) dense output tile
    # scratch: VMEM (2, tm, D) double-buffered gather landing zone
    # sems:    DMA semaphores (2, tm)
    step = pl.program_id(0)
    nsteps = pl.num_programs(0)
    cur = step % 2
    nxt = (step + 1) % 2

    # Prime the pipeline: block 0 -> slot 0.
    @pl.when(step == 0)
    def _():
        _issue_block(idx_ref, w_hbm, scratch, sems, 0, 0, tm)

    # Prefetch next block's rows into the other slot while this block is used.
    @pl.when(step + 1 < nsteps)
    def _():
        _issue_block(idx_ref, w_hbm, scratch, sems, step + 1, nxt, tm)

    # Drain this block's gather DMAs, then one dense (tm, D) store.
    _wait_block(idx_ref, w_hbm, scratch, sems, step, cur, tm)
    o_ref[...] = scratch[cur]


# ----------------------------------------------------------------------------
# Wrapper
# ----------------------------------------------------------------------------
# Conservative: leaves headroom even on v7x (64 MiB VMEM) and for the pipeline
# possibly holding two copies of the full-table input block.
_RESIDENT_TABLE_BYTES_MAX = 16 * 1024 * 1024


def large_embedding_lookup(weight: jax.Array, indices: jax.Array,
                           *, tm: int = 16, path: str = "auto") -> jax.Array:
    """Embedding gather: weight (V, D), integer indices of any shape ->
    output of shape indices.shape + (D,)."""
    assert tm % 8 == 0, "tm must be a multiple of 8 (sublane-dense tiles)"
    V, D = weight.shape
    itemsize = jnp.dtype(weight.dtype).itemsize
    table_bytes = V * D * itemsize

    # Clamp in the wrapper so a bad index can never turn into an OOB HBM gather.
    flat = jnp.clip(indices.reshape(-1).astype(jnp.int32), 0, V - 1)
    N = flat.shape[0]
    n_blocks = pl.cdiv(N, tm)
    n_pad = n_blocks * tm
    if n_pad != N:
        flat = jnp.pad(flat, (0, n_pad - N))   # pad with a valid row (0)

    if path == "auto":
        path = "resident" if table_bytes <= _RESIDENT_TABLE_BYTES_MAX else "hbm"

    cost = pl.CostEstimate(flops=0, transcendentals=0,
                           bytes_accessed=2 * n_pad * D * itemsize)
    out_shape = jax.ShapeDtypeStruct((n_pad, D), weight.dtype)
    out_spec = pl.BlockSpec((tm, D), lambda i, idx: (i, 0))

    if path == "resident":
        grid_spec = pltpu.PrefetchScalarGridSpec(
            num_scalar_prefetch=1,
            grid=(n_blocks,),
            in_specs=[pl.BlockSpec((V, D), lambda i, idx: (0, 0))],  # resident
            out_specs=out_spec,
        )
        out = pl.pallas_call(
            functools.partial(_resident_gather_kernel, tm),
            grid_spec=grid_spec,
            out_shape=out_shape,
            compiler_params=pltpu.CompilerParams(
                dimension_semantics=("parallel",),   # steps independent
                vmem_limit_bytes=int(max(32 << 20,
                                         2 * table_bytes + (16 << 20))),
            ),
            cost_estimate=cost,
        )(flat, weight)
    else:
        grid_spec = pltpu.PrefetchScalarGridSpec(
            num_scalar_prefetch=1,
            grid=(n_blocks,),
            in_specs=[pl.BlockSpec(memory_space=pl.ANY)],   # table stays in HBM
            out_specs=out_spec,
            scratch_shapes=[
                pltpu.VMEM((2, tm, D), weight.dtype),
                pltpu.SemaphoreType.DMA((2, tm)),
            ],
        )
        out = pl.pallas_call(
            functools.partial(_hbm_gather_kernel, tm),
            grid_spec=grid_spec,
            out_shape=out_shape,
            compiler_params=pltpu.CompilerParams(
                # cross-step double-buffer carries state across iterations,
                # so the grid must stay sequential.
                dimension_semantics=("arbitrary",),
            ),
            cost_estimate=cost,
        )(flat, weight)

    return out[:N].reshape(indices.shape + (D,))


if __name__ == "__main__":
    # Small shapes consistent with the module's forward.
    num_embeddings = 64      # vocab size V
    embedding_dim = 128      # D (lane-dense)
    padding_idx = 0

    key = jax.random.PRNGKey(0)
    k_w, k_idx = jax.random.split(key)

    # nn.Embedding init: N(0, 1); padding_idx row zeroed.
    weight = jax.random.normal(k_w, (num_embeddings, embedding_dim), jnp.float32)
    weight = weight.at[padding_idx].set(0.0)

    # indices of "any shape": 26 lookups -> 2 grid blocks of TM=16 (padded tail).
    indices = jax.random.randint(k_idx, (2, 13), 0, num_embeddings, dtype=jnp.int32)

    ref = weight[indices]

    # Resident-table path (table is tiny, auto picks it).
    out_res = jax.block_until_ready(large_embedding_lookup(weight, indices))
    assert out_res.shape == (2, 13, embedding_dim)
    assert jnp.allclose(out_res, ref), "resident path mismatch vs reference gather"

    # HBM manual-gather path (the large-table / v7x path), forced for coverage.
    out_hbm = jax.block_until_ready(
        large_embedding_lookup(weight, indices, path="hbm"))
    assert out_hbm.shape == (2, 13, embedding_dim)
    assert jnp.allclose(out_hbm, ref), "hbm gather path mismatch vs reference gather"

    print("KERNEL_OK")
</pallas_src>

<mosaic_0001>
module attributes {stable_mosaic.version = 11 : i64} {
  func.func @_resident_gather_kernel(%arg0: i32, %arg1: memref<32xi32, #tpu.memory_space<smem>>, %arg2: memref<64x128xf32, #tpu.memory_space<vmem>>, %arg3: memref<16x128xf32, #tpu.memory_space<vmem>>) attributes {dimension_semantics = [#tpu.dimension_semantics<parallel>], iteration_bounds = array<i64: 2>, scalar_prefetch = 1 : i64, scratch_operands = 0 : i64, tpu.core_type = #tpu.core_type<tc>, window_params = [{pipeline_mode = #tpu.pipeline_mode<synchronous>, transform_indices = @transform_0, window_bounds = array<i64: 64, 128>}, {transform_indices = @transform_1, window_bounds = array<i64: 16, 128>}]} {
    %c16_i32 = arith.constant 16 : i32
    %0 = arith.muli %arg0, %c16_i32 : i32
    %c0_i32 = arith.constant 0 : i32
    %1 = arith.addi %0, %c0_i32 : i32
    %2 = arith.index_cast %1 : i32 to index
    %3 = memref.load %arg1[%2] : memref<32xi32, #tpu.memory_space<smem>>
    %4 = arith.index_cast %3 : i32 to index
    %c0 = arith.constant 0 : index
    %5 = vector.load %arg2[%4, %c0] : memref<64x128xf32, #tpu.memory_space<vmem>>, vector<1x128xf32>
    %6 = vector.shape_cast %5 : vector<1x128xf32> to vector<128xf32>
    %c0_0 = arith.constant 0 : index
    %c0_1 = arith.constant 0 : index
    %7 = vector.load %arg3[%c0_0, %c0_1] : memref<16x128xf32, #tpu.memory_space<vmem>>, vector<1x128xf32>
    %8 = vector.shape_cast %7 : vector<1x128xf32> to vector<128xf32>
    %9 = vector.shape_cast %6 : vector<128xf32> to vector<1x128xf32>
    tpu.vector_store %arg3[%c0_0, %c0_1], %9 {strides = array<i32>} : memref<16x128xf32, #tpu.memory_space<vmem>>, vector<1x128xf32>,
    %c1_i32 = arith.constant 1 : i32
    %10 = arith.addi %0, %c1_i32 : i32
    %11 = arith.index_cast %10 : i32 to index
    %12 = memref.load %arg1[%11] : memref<32xi32, #tpu.memory_space<smem>>
    %13 = arith.index_cast %12 : i32 to index
    %c0_2 = arith.constant 0 : index
    %14 = vector.load %arg2[%13, %c0_2] : memref<64x128xf32, #tpu.memory_space<vmem>>, vector<1x128xf32>
    %15 = vector.shape_cast %14 : vector<1x128xf32> to vector<128xf32>
    %c1 = arith.constant 1 : index
    %c0_3 = arith.constant 0 : index
    %16 = vector.load %arg3[%c1, %c0_3] : memref<16x128xf32, #tpu.memory_space<vmem>>, vector<1x128xf32>
    %17 = vector.shape_cast %16 : vector<1x128xf32> to vector<128xf32>
    %18 = vector.shape_cast %15 : vector<128xf32> to vector<1x128xf32>
    tpu.vector_store %arg3[%c1, %c0_3], %18 {strides = array<i32>} : memref<16x128xf32, #tpu.memory_space<vmem>>, vector<1x128xf32>,
    %c2_i32 = arith.constant 2 : i32
    %19 = arith.addi %0, %c2_i32 : i32
    %20 = arith.index_cast %19 : i32 to index
    %21 = memref.load %arg1[%20] : memref<32xi32, #tpu.memory_space<smem>>
    %22 = arith.index_cast %21 : i32 to index
    %c0_4 = arith.constant 0 : index
    %23 = vector.load %arg2[%22, %c0_4] : memref<64x128xf32, #tpu.memory_space<vmem>>, vector<1x128xf32>
    %24 = vector.shape_cast %23 : vector<1x128xf32> to vector<128xf32>
    %c2 = arith.constant 2 : index
    %c0_5 = arith.constant 0 : index
    %25 = vector.load %arg3[%c2, %c0_5] : memref<16x128xf32, #tpu.memory_space<vmem>>, vector<1x128xf32>
    %26 = vector.shape_cast %25 : vector<1x128xf32> to vector<128xf32>
    %27 = vector.shape_cast %24 : vector<128xf32> to vector<1x128xf32>
    tpu.vector_store %arg3[%c2, %c0_5], %27 {strides = array<i32>} : memref<16x128xf32, #tpu.memory_space<vmem>>, vector<1x128xf32>,
    %c3_i32 = arith.constant 3 : i32
    %28 = arith.addi %0, %c3_i32 : i32
    %29 = arith.index_cast %28 : i32 to index
    %30 = memref.load %arg1[%29] : memref<32xi32, #tpu.memory_space<smem>>
    %31 = arith.index_cast %30 : i32 to index
    %c0_6 = arith.constant 0 : index
    %32 = vector.load %arg2[%31, %c0_6] : memref<64x128xf32, #tpu.memory_space<vmem>>, vector<1x128xf32>
    %33 = vector.shape_cast %32 : vector<1x128xf32> to vector<128xf32>
    %c3 = arith.constant 3 : index
    %c0_7 = arith.constant 0 : index
    %34 = vector.load %arg3[%c3, %c0_7] : memref<16x128xf32, #tpu.memory_space<vmem>>, vector<1x128xf32>
    %35 = vector.shape_cast %34 : vector<1x128xf32> to vector<128xf32>
    %36 = vector.shape_cast %33 : vector<128xf32> to vector<1x128xf32>
    tpu.vector_store %arg3[%c3, %c0_7], %36 {strides = array<i32>} : memref<16x128xf32, #tpu.memory_space<vmem>>, vector<1x128xf32>,
    %c4_i32 = arith.constant 4 : i32
    %37 = arith.addi %0, %c4_i32 : i32
    %38 = arith.index_cast %37 : i32 to index
    %39 = memref.load %arg1[%38] : memref<32xi32, #tpu.memory_space<smem>>
    %40 = arith.index_cast %39 : i32 to index
    %c0_8 = arith.constant 0 : index
    %41 = vector.load %arg2[%40, %c0_8] : memref<64x128xf32, #tpu.memory_space<vmem>>, vector<1x128xf32>
    %42 = vector.shape_cast %41 : vector<1x128xf32> to vector<128xf32>
    %c4 = arith.constant 4 : index
    %c0_9 = arith.constant 0 : index
    %43 = vector.load %arg3[%c4, %c0_9] : memref<16x128xf32, #tpu.memory_space<vmem>>, vector<1x128xf32>
    %44 = vector.shape_cast %43 : vector<1x128xf32> to vector<128xf32>
    %45 = vector.shape_cast %42 : vector<128xf32> to vector<1x128xf32>
    tpu.vector_store %arg3[%c4, %c0_9], %45 {strides = array<i32>} : memref<16x128xf32, #tpu.memory_space<vmem>>, vector<1x128xf32>,
    %c5_i32 = arith.constant 5 : i32
    %46 = arith.addi %0, %c5_i32 : i32
    %47 = arith.index_cast %46 : i32 to index
    %48 = memref.load %arg1[%47] : memref<32xi32, #tpu.memory_space<smem>>
    %49 = arith.index_cast %48 : i32 to index
    %c0_10 = arith.constant 0 : index
    %50 = vector.load %arg2[%49, %c0_10] : memref<64x128xf32, #tpu.memory_space<vmem>>, vector<1x128xf32>
    %51 = vector.shape_cast %50 : vector<1x128xf32> to vector<128xf32>
    %c5 = arith.constant 5 : index
    %c0_11 = arith.constant 0 : index
    %52 = vector.load %arg3[%c5, %c0_11] : memref<16x128xf32, #tpu.memory_space<vmem>>, vector<1x128xf32>
    %53 = vector.shape_cast %52 : vector<1x128xf32> to vector<128xf32>
    %54 = vector.shape_cast %51 : vector<128xf32> to vector<1x128xf32>
    tpu.vector_store %arg3[%c5, %c0_11], %54 {strides = array<i32>} : memref<16x128xf32, #tpu.memory_space<vmem>>, vector<1x128xf32>,
    %c6_i32 = arith.constant 6 : i32
    %55 = arith.addi %0, %c6_i32 : i32
    %56 = arith.index_cast %55 : i32 to index
    %57 = memref.load %arg1[%56] : memref<32xi32, #tpu.memory_space<smem>>
    %58 = arith.index_cast %57 : i32 to index
    %c0_12 = arith.constant 0 : index
    %59 = vector.load %arg2[%58, %c0_12] : memref<64x128xf32, #tpu.memory_space<vmem>>, vector<1x128xf32>
    %60 = vector.shape_cast %59 : vector<1x128xf32> to vector<128xf32>
    %c6 = arith.constant 6 : index
    %c0_13 = arith.constant 0 : index
    %61 = vector.load %arg3[%c6, %c0_13] : memref<16x128xf32, #tpu.memory_space<vmem>>, vector<1x128xf32>
    %62 = vector.shape_cast %61 : vector<1x128xf32> to vector<128xf32>
    %63 = vector.shape_cast %60 : vector<128xf32> to vector<1x128xf32>
    tpu.vector_store %arg3[%c6, %c0_13], %63 {strides = array<i32>} : memref<16x128xf32, #tpu.memory_space<vmem>>, vector<1x128xf32>,
    %c7_i32 = arith.constant 7 : i32
    %64 = arith.addi %0, %c7_i32 : i32
    %65 = arith.index_cast %64 : i32 to index
    %66 = memref.load %arg1[%65] : memref<32xi32, #tpu.memory_space<smem>>
    %67 = arith.index_cast %66 : i32 to index
    %c0_14 = arith.constant 0 : index
    %68 = vector.load %arg2[%67, %c0_14] : memref<64x128xf32, #tpu.memory_space<vmem>>, vector<1x128xf32>
    %69 = vector.shape_cast %68 : vector<1x128xf32> to vector<128xf32>
    %c7 = arith.constant 7 : index
    %c0_15 = arith.constant 0 : index
    %70 = vector.load %arg3[%c7, %c0_15] : memref<16x128xf32, #tpu.memory_space<vmem>>, vector<1x128xf32>
    %71 = vector.shape_cast %70 : vector<1x128xf32> to vector<128xf32>
    %72 = vector.shape_cast %69 : vector<128xf32> to vector<1x128xf32>
    tpu.vector_store %arg3[%c7, %c0_15], %72 {strides = array<i32>} : memref<16x128xf32, #tpu.memory_space<vmem>>, vector<1x128xf32>,
    %c8_i32 = arith.constant 8 : i32
    %73 = arith.addi %0, %c8_i32 : i32
    %74 = arith.index_cast %73 : i32 to index
    %75 = memref.load %arg1[%74] : memref<32xi32, #tpu.memory_space<smem>>
    %76 = arith.index_cast %75 : i32 to index
    %c0_16 = arith.constant 0 : index
    %77 = vector.load %arg2[%76, %c0_16] : memref<64x128xf32, #tpu.memory_space<vmem>>, vector<1x128xf32>
    %78 = vector.shape_cast %77 : vector<1x128xf32> to vector<128xf32>
    %c8 = arith.constant 8 : index
    %c0_17 = arith.constant 0 : index
    %79 = vector.load %arg3[%c8, %c0_17] : memref<16x128xf32, #tpu.memory_space<vmem>>, vector<1x128xf32>
    %80 = vector.shape_cast %79 : vector<1x128xf32> to vector<128xf32>
    %81 = vector.shape_cast %78 : vector<128xf32> to vector<1x128xf32>
    tpu.vector_store %arg3[%c8, %c0_17], %81 {strides = array<i32>} : memref<16x128xf32, #tpu.memory_space<vmem>>, vector<1x128xf32>,
    %c9_i32 = arith.constant 9 : i32
    %82 = arith.addi %0, %c9_i32 : i32
    %83 = arith.index_cast %82 : i32 to index
    %84 = memref.load %arg1[%83] : memref<32xi32, #tpu.memory_space<smem>>
    %85 = arith.index_cast %84 : i32 to index
    %c0_18 = arith.constant 0 : index
    %86 = vector.load %arg2[%85, %c0_18] : memref<64x128xf32, #tpu.memory_space<vmem>>, vector<1x128xf32>
    %87 = vector.shape_cast %86 : vector<1x128xf32> to vector<128xf32>
    %c9 = arith.constant 9 : index
    %c0_19 = arith.constant 0 : index
    %88 = vector.load %arg3[%c9, %c0_19] : memref<16x128xf32, #tpu.memory_space<vmem>>, vector<1x128xf32>
    %89 = vector.shape_cast %88 : vector<1x128xf32> to vector<128xf32>
    %90 = vector.shape_cast %87 : vector<128xf32> to vector<1x128xf32>
    tpu.vector_store %arg3[%c9, %c0_19], %90 {strides = array<i32>} : memref<16x128xf32, #tpu.memory_space<vmem>>, vector<1x128xf32>,
    %c10_i32 = arith.constant 10 : i32
    %91 = arith.addi %0, %c10_i32 : i32
    %92 = arith.index_cast %91 : i32 to index
    %93 = memref.load %arg1[%92] : memref<32xi32, #tpu.memory_space<smem>>
    %94 = arith.index_cast %93 : i32 to index
    %c0_20 = arith.constant 0 : index
    %95 = vector.load %arg2[%94, %c0_20] : memref<64x128xf32, #tpu.memory_space<vmem>>, vector<1x128xf32>
    %96 = vector.shape_cast %95 : vector<1x128xf32> to vector<128xf32>
    %c10 = arith.constant 10 : index
    %c0_21 = arith.constant 0 : index
    %97 = vector.load %arg3[%c10, %c0_21] : memref<16x128xf32, #tpu.memory_space<vmem>>, vector<1x128xf32>
    %98 = vector.shape_cast %97 : vector<1x128xf32> to vector<128xf32>
    %99 = vector.shape_cast %96 : vector<128xf32> to vector<1x128xf32>
    tpu.vector_store %arg3[%c10, %c0_21], %99 {strides = array<i32>} : memref<16x128xf32, #tpu.memory_space<vmem>>, vector<1x128xf32>,
    %c11_i32 = arith.constant 11 : i32
    %100 = arith.addi %0, %c11_i32 : i32
    %101 = arith.index_cast %100 : i32 to index
    %102 = memref.load %arg1[%101] : memref<32xi32, #tpu.memory_space<smem>>
    %103 = arith.index_cast %102 : i32 to index
    %c0_22 = arith.constant 0 : index
    %104 = vector.load %arg2[%103, %c0_22] : memref<64x128xf32, #tpu.memory_space<vmem>>, vector<1x128xf32>
    %105 = vector.shape_cast %104 : vector<1x128xf32> to vector<128xf32>
    %c11 = arith.constant 11 : index
    %c0_23 = arith.constant 0 : index
    %106 = vector.load %arg3[%c11, %c0_23] : memref<16x128xf32, #tpu.memory_space<vmem>>, vector<1x128xf32>
    %107 = vector.shape_cast %106 : vector<1x128xf32> to vector<128xf32>
    %108 = vector.shape_cast %105 : vector<128xf32> to vector<1x128xf32>
    tpu.vector_store %arg3[%c11, %c0_23], %108 {strides = array<i32>} : memref<16x128xf32, #tpu.memory_space<vmem>>, vector<1x128xf32>,
    %c12_i32 = arith.constant 12 : i32
    %109 = arith.addi %0, %c12_i32 : i32
    %110 = arith.index_cast %109 : i32 to index
    %111 = memref.load %arg1[%110] : memref<32xi32, #tpu.memory_space<smem>>
    %112 = arith.index_cast %111 : i32 to index
    %c0_24 = arith.constant 0 : index
    %113 = vector.load %arg2[%112, %c0_24] : memref<64x128xf32, #tpu.memory_space<vmem>>, vector<1x128xf32>
    %114 = vector.shape_cast %113 : vector<1x128xf32> to vector<128xf32>
    %c12 = arith.constant 12 : index
    %c0_25 = arith.constant 0 : index
    %115 = vector.load %arg3[%c12, %c0_25] : memref<16x128xf32, #tpu.memory_space<vmem>>, vector<1x128xf32>
    %116 = vector.shape_cast %115 : vector<1x128xf32> to vector<128xf32>
    %117 = vector.shape_cast %114 : vector<128xf32> to vector<1x128xf32>
    tpu.vector_store %arg3[%c12, %c0_25], %117 {strides = array<i32>} : memref<16x128xf32, #tpu.memory_space<vmem>>, vector<1x128xf32>,
    %c13_i32 = arith.constant 13 : i32
    %118 = arith.addi %0, %c13_i32 : i32
    %119 = arith.index_cast %118 : i32 to index
    %120 = memref.load %arg1[%119] : memref<32xi32, #tpu.memory_space<smem>>
    %121 = arith.index_cast %120 : i32 to index
    %c0_26 = arith.constant 0 : index
    %122 = vector.load %arg2[%121, %c0_26] : memref<64x128xf32, #tpu.memory_space<vmem>>, vector<1x128xf32>
    %123 = vector.shape_cast %122 : vector<1x128xf32> to vector<128xf32>
    %c13 = arith.constant 13 : index
    %c0_27 = arith.constant 0 : index
    %124 = vector.load %arg3[%c13, %c0_27] : memref<16x128xf32, #tpu.memory_space<vmem>>, vector<1x128xf32>
    %125 = vector.shape_cast %124 : vector<1x128xf32> to vector<128xf32>
    %126 = vector.shape_cast %123 : vector<128xf32> to vector<1x128xf32>
    tpu.vector_store %arg3[%c13, %c0_27], %126 {strides = array<i32>} : memref<16x128xf32, #tpu.memory_space<vmem>>, vector<1x128xf32>,
    %c14_i32 = arith.constant 14 : i32
    %127 = arith.addi %0, %c14_i32 : i32
    %128 = arith.index_cast %127 : i32 to index
    %129 = memref.load %arg1[%128] : memref<32xi32, #tpu.memory_space<smem>>
    %130 = arith.index_cast %129 : i32 to index
    %c0_28 = arith.constant 0 : index
    %131 = vector.load %arg2[%130, %c0_28] : memref<64x128xf32, #tpu.memory_space<vmem>>, vector<1x128xf32>
    %132 = vector.shape_cast %131 : vector<1x128xf32> to vector<128xf32>
    %c14 = arith.constant 14 : index
    %c0_29 = arith.constant 0 : index
    %133 = vector.load %arg3[%c14, %c0_29] : memref<16x128xf32, #tpu.memory_space<vmem>>, vector<1x128xf32>
    %134 = vector.shape_cast %133 : vector<1x128xf32> to vector<128xf32>
    %135 = vector.shape_cast %132 : vector<128xf32> to vector<1x128xf32>
    tpu.vector_store %arg3[%c14, %c0_29], %135 {strides = array<i32>} : memref<16x128xf32, #tpu.memory_space<vmem>>, vector<1x128xf32>,
    %c15_i32 = arith.constant 15 : i32
    %136 = arith.addi %0, %c15_i32 : i32
    %137 = arith.index_cast %136 : i32 to index
    %138 = memref.load %arg1[%137] : memref<32xi32, #tpu.memory_space<smem>>
    %139 = arith.index_cast %138 : i32 to index
    %c0_30 = arith.constant 0 : index
    %140 = vector.load %arg2[%139, %c0_30] : memref<64x128xf32, #tpu.memory_space<vmem>>, vector<1x128xf32>
    %141 = vector.shape_cast %140 : vector<1x128xf32> to vector<128xf32>
    %c15 = arith.constant 15 : index
    %c0_31 = arith.constant 0 : index
    %142 = vector.load %arg3[%c15, %c0_31] : memref<16x128xf32, #tpu.memory_space<vmem>>, vector<1x128xf32>
    %143 = vector.shape_cast %142 : vector<1x128xf32> to vector<128xf32>
    %144 = vector.shape_cast %141 : vector<128xf32> to vector<1x128xf32>
    tpu.vector_store %arg3[%c15, %c0_31], %144 {strides = array<i32>} : memref<16x128xf32, #tpu.memory_space<vmem>>, vector<1x128xf32>,
    return
  }
  func.func @transform_0(%arg0: i32, %arg1: memref<32xi32, #tpu.memory_space<smem>>) -> (i32, i32) {
    %c0_i32 = arith.constant 0 : i32
    %c0_i32_0 = arith.constant 0 : i32
    %c0_i32_1 = arith.constant 0 : i32
    return %c0_i32, %c0_i32_0 : i32, i32
  }
  func.func @transform_1(%arg0: i32, %arg1: memref<32xi32, #tpu.memory_space<smem>>) -> (i32, i32) {
    %c0_i32 = arith.constant 0 : i32
    %c0_i32_0 = arith.constant 0 : i32
    return %arg0, %c0_i32 : i32, i32
  }
}

</mosaic_0001>

<llo_original>
// kernel: tpu_custom_call.1
$region0: #{tpu_custom_call.1}
  #allocation0 [shape = 'u32[]', space=smem, size = 0x4, offset = 0x4, fixed_abs, tag = 'smem constant byte address 0x4 - core index']
  #allocation1 [shape = 'u32[144,128]{1,0:T(1,128)}', space=vmem, size = 0x12000, scoped, tag = 'internal scratch']
  #allocation2 [shape = 's32[1]{0}', space=sflag, size = 0x4, scoped, tag = 'scoped memory for tpu_custom_call.1']
  #allocation3 [shape = 'u8[512]{0}', space=smem, size = 0x200, scoped, tag = 'prefetched SMEM operand 0']
  %s0 = inlined_call_operand.hbm [shape: s32[32], index: 0, kind: input, shape index: {}]
  %s1 = inlined_call_operand.hbm [shape: f32[64,128], index: 1, kind: input, shape index: {}]
  %s2 = inlined_call_operand.hbm [shape: f32[32,128], index: 2, kind: output, shape index: {}]
  %s3 = sld [smem:[#allocation0]]
  $region41: #{tpu_custom_call.1} parent=0
    _
  %s5 = ssub.s32 1, %s3
  %s6 = scalar_select 0, %s5, %s3
  %8 = dma.hbm_to_smem %s0, 16, [#allocation3], [#allocation2]
  %9 = dma.done [#allocation2], 16
  %10 = sfence
  $region1: #{tpu_custom_call.1} parent=0
    #allocation4 [shape = 'u8[32768]{0}', space=vmem, size = 0x8000, scoped, tag = 'input window, operand 1, single buffered']
    #allocation5 [shape = 's32[2]{0}', space=sflag, size = 0x8, scoped, tag = 'scoped memory for tpu_custom_call.1']
    #allocation6 [shape = 's32[2]{0}', space=sflag, size = 0x8, scoped, tag = 'scoped memory for tpu_custom_call.1']
    #allocation7 [shape = 'u8[16384]{0}', space=vmem, size = 0x4000, scoped, tag = 'output window, operand 0']
    %11 = vsyncpa [#allocation5], 0
    %12 = vsyncpa [#allocation6], 0
    %s13 = scalar_lea.sflag [#allocation6], 1
    %14 = vsyncpa %s13, 0
    loop: start=0, step=1, limit=4
    $region2: #{tpu_custom_call.1} parent=1 // loop_pre_header
      _
    $region3: #{tpu_custom_call.1} parent=1 // loop_header
      %s16 = sphi 0, %s20
      %p17 = scmp.ge.s32.totalorder %s16, 4
      %s24 = sphi 0, %s24
      %s26 = sphi 0, %s24
      %s27 = sphi 0, %s26
      %s41 = sphi 0, %s27
      %s47 = sphi 0, %s49
      %s50 = sphi 0, %s47
      %s51 = sphi 0, %s50
      %s67 = sphi 0, %s51
    $region4: #{tpu_custom_call.1} parent=1 // loop_header_branch
      %19 = sbr.rel (%p17) target = $region8
    $region5: #{tpu_custom_call.1} parent=1 // loop_body
      %s21 = ssub.s32 %s16, 1
      %s22 = ssub.s32 %s16, 2
      %s23 = sadd.s32 %s16, 1
      %s25 = sadd.s32 %s24, 1
      %p28 = scmp.eq.s32.totalorder %s16, 1
      %p29 = scmp.ne.s32.totalorder %s24, %s26
      %p30 = scmp.eq.s32.totalorder %s16, 0
      %p31 = por %p29, %p30
      %p32 = scmp.ne.s32.totalorder %s24, %s26
      %p33 = scmp.eq.s32.totalorder %s21, 1
      %p34 = por %p32, %p33
      %p35 = scmp.ne.s32.totalorder %s26, %s27
      %p36 = scmp.eq.s32.totalorder %s21, 0
      %p37 = por %p35, %p36
      %p38 = scmp.ne.s32.totalorder %s26, %s27
      %p39 = scmp.eq.s32.totalorder %s22, 1
      %p40 = por %p38, %p39
      %p42 = scmp.ne.s32.totalorder %s27, %s41
      %p43 = scmp.eq.s32.totalorder %s22, 0
      %p44 = por %p42, %p43
      %s45 = ssub.s32 %s16, %s23
      %p46 = scmp.eq.s32.totalorder %s45, 0
      %s48 = sadd.s32 %s47, 1
      %s49 = scalar_select %p46, %s47, %s48
      %p52 = pneg %p46
      %p53 = scmp.eq.s32.totalorder %s16, 1
      %p54 = por %p52, %p53
      %p55 = scmp.ne.s32.totalorder %s47, %s50
      %p56 = scmp.eq.s32.totalorder %s16, 0
      %p57 = por %p55, %p56
      %p58 = scmp.ne.s32.totalorder %s47, %s50
      %p59 = scmp.eq.s32.totalorder %s21, 1
      %p60 = por %p58, %p59
      %p61 = scmp.ne.s32.totalorder %s50, %s51
      %p62 = scmp.eq.s32.totalorder %s21, 0
      %p63 = por %p61, %p62
      %p64 = scmp.ne.s32.totalorder %s50, %s51
      %p65 = scmp.eq.s32.totalorder %s22, 1
      %p66 = por %p64, %p65
      %p68 = scmp.ne.s32.totalorder %s51, %s67
      %p69 = scmp.eq.s32.totalorder %s22, 0
      %p70 = por %p68, %p69
      %p71 = scmp.le.s32.totalorder 1, %s16
      %p72 = scmp.lt.s32.totalorder %s16, 3
      %p73 = pnand %p71, %p72
      %p74 = pneg %p73
      // Predicated region
      $region9: #{tpu_custom_call.1} parent=5 // pred_check
        _
      $region10: #{tpu_custom_call.1} parent=5 // pred_check_branch
        %76 = sbr.rel (%p73) target = $region12
      $region11: #{tpu_custom_call.1} parent=5 // pred_region
        %s77 = ssub.s32 %s16, 1
        // Predicated region
        $region13: #{tpu_custom_call.1} parent=11 // pred_check
          %p78 = pneg %p37
        $region14: #{tpu_custom_call.1} parent=11 // pred_check_branch
          %80 = sbr.rel (%p78) target = $region16
        $region15: #{tpu_custom_call.1} parent=11 // pred_region
          %s82 = ssub.s32 1024, 1024
          %83 = vsyncadd [#allocation5], %s82
          %s84 = sshll.u32 [#allocation4], 4
          %s85 = int_to_ptr.vmem [resolvable:$true] %s84
          %90 = dma.hbm_to_vmem [thread:$0]  %s1, 1024, %s85, [#allocation5], 128, 128, 8
        $region16: #{tpu_custom_call.1} parent=11 // pred_fallthru
          _
      $region12: #{tpu_custom_call.1} parent=5 // pred_fallthru
        _
      %p91 = scmp.lt.s32.totalorder %s16, 2
      // Predicated region
      $region17: #{tpu_custom_call.1} parent=5 // pred_check
        %p92 = pneg %p91
      $region18: #{tpu_custom_call.1} parent=5 // pred_check_branch
        %94 = sbr.rel (%p92) target = $region20
      $region19: #{tpu_custom_call.1} parent=5 // pred_region
        _
      $region20: #{tpu_custom_call.1} parent=5 // pred_fallthru
        _
      %p95 = scmp.le.s32.totalorder 1, %s16
      %p96 = scmp.lt.s32.totalorder %s16, 3
      %p97 = pnand %p95, %p96
      %p98 = pneg %p97
      // Predicated region
      $region21: #{tpu_custom_call.1} parent=5 // pred_check
        _
      $region22: #{tpu_custom_call.1} parent=5 // pred_check_branch
        %100 = sbr.rel (%p97) target = $region24
      $region23: #{tpu_custom_call.1} parent=5 // pred_region
        %s101 = ssub.s32 %s16, 1
        // Predicated region
        $region25: #{tpu_custom_call.1} parent=23 // pred_check
          %p102 = pneg %p37
        $region26: #{tpu_custom_call.1} parent=23 // pred_check_branch
          %104 = sbr.rel (%p102) target = $region28
        $region27: #{tpu_custom_call.1} parent=23 // pred_region
          %105 = dma.done [#allocation5], 1024
        $region28: #{tpu_custom_call.1} parent=23 // pred_fallthru
          _
        %p106 = pneg %p37
        %p107 = pneg %p34
        %p108 = pneg %p63
        %p109 = pneg %p60
        %s110 = sand.u32 %s50, 1
        %s111 = scalar_lea.sflag [#allocation6], %s110
        %s112 = sand.u32 %s50, 1
        %s113 = smul.addr %s112, 16
        %s114 = scalar_lea.vmem [#allocation7], %s113
        %s115 = smul.u32 2, %s21
        %s116 = smul.u32 %s21, 16
        %s117 = sld [smem:[#allocation3 + %s116]]
        %s118 = scalar_lea.vmem [#allocation4], %s117
        %v119 = vld [vmem:[%s118] sm:$0x1]
        %120 = vst [vmem:[%s114] sm:$0x1] %v119
        %s121 = sadd.s32 %s116, 1
        %s122 = sld [smem:[#allocation3 + %s121]]
        %s123 = scalar_lea.vmem [#allocation4], %s122
        %v124 = vld [vmem:[%s123] sm:$0x1]
        %125 = vst [vmem:[%s114 + $0x1] sm:$0x1] %v124
        %s126 = sadd.s32 %s116, 2
        %s127 = sld [smem:[#allocation3 + %s126]]
        %s128 = scalar_lea.vmem [#allocation4], %s127
        %v129 = vld [vmem:[%s128] sm:$0x1]
        %130 = vst [vmem:[%s114 + $0x2] sm:$0x1] %v129
        %s131 = sadd.s32 %s116, 3
        %s132 = sld [smem:[#allocation3 + %s131]]
        %s133 = scalar_lea.vmem [#allocation4], %s132
        %v134 = vld [vmem:[%s133] sm:$0x1]
        %135 = vst [vmem:[%s114 + $0x3] sm:$0x1] %v134
        %s136 = sadd.s32 %s116, 4
        %s137 = sld [smem:[#allocation3 + %s136]]
        %s138 = scalar_lea.vmem [#allocation4], %s137
        %v139 = vld [vmem:[%s138] sm:$0x1]
        %140 = vst [vmem:[%s114 + $0x4] sm:$0x1] %v139
        %s141 = sadd.s32 %s116, 5
        %s142 = sld [smem:[#allocation3 + %s141]]
        %s143 = scalar_lea.vmem [#allocation4], %s142
        %v144 = vld [vmem:[%s143] sm:$0x1]
        %145 = vst [vmem:[%s114 + $0x5] sm:$0x1] %v144
        %s146 = sadd.s32 %s116, 6
        %s147 = sld [smem:[#allocation3 + %s146]]
        %s148 = scalar_lea.vmem [#allocation4], %s147
        %v149 = vld [vmem:[%s148] sm:$0x1]
        %150 = vst [vmem:[%s114 + $0x6] sm:$0x1] %v149
        %s151 = sadd.s32 %s116, 7
        %s152 = sld [smem:[#allocation3 + %s151]]
        %s153 = scalar_lea.vmem [#allocation4], %s152
        %v154 = vld [vmem:[%s153] sm:$0x1]
        %155 = vst [vmem:[%s114 + $0x7] sm:$0x1] %v154
        %s156 = sadd.s32 %s116, 8
        %s157 = sld [smem:[#allocation3 + %s156]]
        %s158 = scalar_lea.vmem [#allocation4], %s157
        %v159 = vld [vmem:[%s158] sm:$0x1]
        %160 = vst [vmem:[%s114 + $0x8] sm:$0x1] %v159
        %s161 = sadd.s32 %s116, 9
        %s162 = sld [smem:[#allocation3 + %s161]]
        %s163 = scalar_lea.vmem [#allocation4], %s162
        %v164 = vld [vmem:[%s163] sm:$0x1]
        %165 = vst [vmem:[%s114 + $0x9] sm:$0x1] %v164
        %s166 = sadd.s32 %s116, 10
        %s167 = sld [smem:[#allocation3 + %s166]]
        %s168 = scalar_lea.vmem [#allocation4], %s167
        %v169 = vld [vmem:[%s168] sm:$0x1]
        %170 = vst [vmem:[%s114 + $0xa] sm:$0x1] %v169
        %s171 = sadd.s32 %s116, 11
        %s172 = sld [smem:[#allocation3 + %s171]]
        %s173 = scalar_lea.vmem [#allocation4], %s172
        %v174 = vld [vmem:[%s173] sm:$0x1]
        %175 = vst [vmem:[%s114 + $0xb] sm:$0x1] %v174
        %s176 = sadd.s32 %s116, 12
        %s177 = sld [smem:[#allocation3 + %s176]]
        %s178 = scalar_lea.vmem [#allocation4], %s177
        %v179 = vld [vmem:[%s178] sm:$0x1]
        %180 = vst [vmem:[%s114 + $0xc] sm:$0x1] %v179
        %s181 = sadd.s32 %s116, 13
        %s182 = sld [smem:[#allocation3 + %s181]]
        %s183 = scalar_lea.vmem [#allocation4], %s182
        %v184 = vld [vmem:[%s183] sm:$0x1]
        %185 = vst [vmem:[%s114 + $0xd] sm:$0x1] %v184
        %s186 = sadd.s32 %s116, 14
        %s187 = sld [smem:[#allocation3 + %s186]]
        %s188 = scalar_lea.vmem [#allocation4], %s187
        %v189 = vld [vmem:[%s188] sm:$0x1]
        %190 = vst [vmem:[%s114 + $0xe] sm:$0x1] %v189
        %s191 = sadd.s32 %s116, 15
        %s192 = sld [smem:[#allocation3 + %s191]]
        %s193 = scalar_lea.vmem [#allocation4], %s192
        %v194 = vld [vmem:[%s193] sm:$0x1]
        %195 = vst [vmem:[%s114 + $0xf] sm:$0x1] %v194
        %s196 = sand.u32 %s50, 1
        %s197 = scalar_lea.sflag [#allocation6], %s196
        %s198 = sand.u32 %s50, 1
        %s199 = smul.addr %s198, 16
        %s200 = scalar_lea.vmem [#allocation7], %s199
        // Predicated region
        $region29: #{tpu_custom_call.1} parent=23 // pred_check
          %p201 = pneg %p60
        $region30: #{tpu_custom_call.1} parent=23 // pred_check_branch
          %203 = sbr.rel (%p201) target = $region32
        $region31: #{tpu_custom_call.1} parent=23 // pred_region
          %s204 = smul.u32 2, %s21
          %s206 = ssub.s32 256, 256
          %207 = vsyncadd %s197, %s206
          %s208 = smul.addr %s204, 128
          %s209 = scalar_lea.hbm %s2, %s208
          %s210 = sshll.u32 %s200, 4
          %s211 = int_to_ptr.vmem [resolvable:$true] %s210
          %216 = dma.vmem_to_hbm [thread:$0]  %s211, 256, %s209, %s197, 128, 128, 8
        $region32: #{tpu_custom_call.1} parent=23 // pred_fallthru
          _
      $region24: #{tpu_custom_call.1} parent=5 // pred_fallthru
        _
      %p217 = scmp.le.s32.totalorder 2, %s16
      // Predicated region
      $region33: #{tpu_custom_call.1} parent=5 // pred_check
        %p218 = pneg %p217
      $region34: #{tpu_custom_call.1} parent=5 // pred_check_branch
        %220 = sbr.rel (%p218) target = $region36
      $region35: #{tpu_custom_call.1} parent=5 // pred_region
        %s221 = ssub.s32 %s16, 2
        // Predicated region
        $region37: #{tpu_custom_call.1} parent=35 // pred_check
          %p222 = pneg %p66
        $region38: #{tpu_custom_call.1} parent=35 // pred_check_branch
          %224 = sbr.rel (%p222) target = $region40
        $region39: #{tpu_custom_call.1} parent=35 // pred_region
          %s225 = sand.u32 %s51, 1
          %s226 = scalar_lea.sflag [#allocation6], %s225
          %s227 = sand.u32 %s51, 1
          %s228 = smul.addr %s227, 16
          %s229 = scalar_lea.vmem [#allocation7], %s228
          %230 = dma.done %s226, 256
        $region40: #{tpu_custom_call.1} parent=35 // pred_fallthru
          _
      $region36: #{tpu_custom_call.1} parent=5 // pred_fallthru
        _
    $region6: #{tpu_custom_call.1} parent=1 // loop_footer
      %s20 = sadd.s32 1, %s16
    $region7: #{tpu_custom_call.1} parent=1 // loop_footer_branch
      %15 = sbr.rel target = $region3
    $region8: #{tpu_custom_call.1} parent=1 // loop_exit
      _
    %231 = vsyncpa [#allocation5], 1
    %s232 = scalar_lea.sflag [#allocation5], 1
    %233 = vsyncpa %s232, 1
    %234 = vsyncpa [#allocation6], 1
    %s235 = scalar_lea.sflag [#allocation6], 1
    %236 = vsyncpa %s235, 1

</llo_original>
